<compile_context>
chip_gen: v7x
topology: tpu7x:2x2x1
jax: 0.10.0
libtpu: 0.0.40
codegen_flags: <defaults>
</compile_context>

<pallas_src>
import jax
import jax.numpy as jnp
import numpy as np
from jax.experimental import pallas as pl
from jax.experimental.pallas import tpu as pltpu


def resblock_kernel(xpad_ref, w_ref, ss_ref, out_ref):
    """One block of B_blk batch elements per grid step.

    xpad_ref : (B_blk, Lp, Cp)   zero-padded input, channels-last, Cp lane-dense
    w_ref    : (2, K*Cp, Cp)     [conv1, conv2] im2col weights
    ss_ref   : (4, Cp)           rows = [scale1, shift1, scale2, shift2]
    out_ref  : (B_blk, L, Cp)
    """
    B, Lp, Cp = xpad_ref.shape
    KC = w_ref.shape[1]
    K = KC // Cp
    pad = (K - 1) // 2
    L = Lp - 2 * pad
    M = B * L

    xv = xpad_ref[...]  # (B, Lp, Cp)

    # ---- conv1 via im2col: one (M, K*Cp) x (K*Cp, Cp) matmul ----
    slab1 = jnp.concatenate([xv[:, k:k + L, :] for k in range(K)], axis=-1)
    slab1 = slab1.reshape(M, KC)
    acc1 = jnp.dot(slab1, w_ref[0], preferred_element_type=jnp.float32)
    # BN1 (folded scale/shift, conv bias included) + ReLU; Dropout == identity (eval)
    h1 = jnp.maximum(acc1 * ss_ref[0:1, :] + ss_ref[1:2, :], 0.0)

    # ---- re-pad the intermediate in registers (no VMEM scratch round-trip) ----
    h1_3d = h1.reshape(B, L, Cp)
    zrow = jnp.zeros((B, pad, Cp), jnp.float32)
    h1p = jnp.concatenate([zrow, h1_3d, zrow], axis=1)  # (B, Lp, Cp)

    # ---- conv2 via im2col ----
    slab2 = jnp.concatenate([h1p[:, k:k + L, :] for k in range(K)], axis=-1)
    slab2 = slab2.reshape(M, KC)
    acc2 = jnp.dot(slab2, w_ref[1], preferred_element_type=jnp.float32)
    h2 = jnp.maximum(acc2 * ss_ref[2:3, :] + ss_ref[3:4, :], 0.0)

    # ---- residual add ----
    res = xv[:, pad:pad + L, :]
    out_ref[...] = (h2.reshape(B, L, Cp) + res).astype(out_ref.dtype)


def resblock_pallas(x_ncl, params, eps=1e-5):
    """x_ncl: (N, C, L) float32, like the PyTorch module input (NCL)."""
    N, C, L = x_ncl.shape
    K = params["w1"].shape[-1]
    pad = (K - 1) // 2
    Lp = L + 2 * pad

    # lane-dense channel padding
    Cp = 128 * ((C + 127) // 128)

    # batch block: aim for >=~256 matmul rows per grid step, capped by N
    B_blk = min(N, max(1, -(-256 // L)))
    N_pad = -(-N // B_blk) * B_blk
    Ng = N_pad // B_blk

    # NCL -> NLC, pad channels to Cp, pad length by `pad` on both sides, pad batch
    x_nlc = jnp.transpose(x_ncl, (0, 2, 1)).astype(jnp.float32)
    xpad = jnp.pad(x_nlc, ((0, N_pad - N), (pad, pad), (0, Cp - C)))

    # conv weights: torch (C_out, C_in, K) -> im2col (K*Cp, Cp)
    def pack_w(w):
        wt = jnp.transpose(w, (2, 1, 0)).astype(jnp.float32)        # (K, C_in, C_out)
        wt = jnp.pad(wt, ((0, 0), (0, Cp - C), (0, Cp - C)))        # (K, Cp, Cp)
        return wt.reshape(K * Cp, Cp)

    w_packed = jnp.stack([pack_w(params["w1"]), pack_w(params["w2"])])  # (2, K*Cp, Cp)

    # fold conv bias + batchnorm (running stats) into per-channel scale/shift
    s1 = params["g1"] / jnp.sqrt(params["v1"] + eps)
    sh1 = (params["b1"] - params["m1"]) * s1 + params["be1"]
    s2 = params["g2"] / jnp.sqrt(params["v2"] + eps)
    sh2 = (params["b2"] - params["m2"]) * s2 + params["be2"]
    ss = jnp.stack([s1, sh1, s2, sh2]).astype(jnp.float32)          # (4, C)
    ss = jnp.pad(ss, ((0, 0), (0, Cp - C)))                         # (4, Cp)

    out_nlc = pl.pallas_call(
        resblock_kernel,
        out_shape=jax.ShapeDtypeStruct((N_pad, L, Cp), jnp.float32),
        grid_spec=pltpu.PrefetchScalarGridSpec(
            num_scalar_prefetch=0,
            grid=(Ng,),
            in_specs=[
                pl.BlockSpec((B_blk, Lp, Cp), lambda n: (n, 0, 0)),     # xpad
                pl.BlockSpec((2, K * Cp, Cp), lambda n: (0, 0, 0)),     # packed weights
                pl.BlockSpec((4, Cp), lambda n: (0, 0)),                # packed scale/shift
            ],
            out_specs=pl.BlockSpec((B_blk, L, Cp), lambda n: (n, 0, 0)),
        ),
        compiler_params=pltpu.CompilerParams(dimension_semantics=("parallel",)),
    )(xpad, w_packed, ss)

    # drop batch/channel padding, back to NCL
    return jnp.transpose(out_nlc[:N, :, :C], (0, 2, 1))


def resblock_reference(x_ncl, params, eps=1e-5):
    """Pure-JAX reference reproducing the PyTorch eval-mode forward (NCL)."""
    K = params["w1"].shape[-1]
    pad = (K - 1) // 2

    def conv_bn_relu(x, w, b, g, be, m, v):
        y = jax.lax.conv_general_dilated(
            x, w, window_strides=(1,), padding=[(pad, pad)],
            dimension_numbers=("NCH", "OIH", "NCH"))
        y = y + b[None, :, None]
        y = (y - m[None, :, None]) / jnp.sqrt(v[None, :, None] + eps)
        y = y * g[None, :, None] + be[None, :, None]
        return jnp.maximum(y, 0.0)  # Dropout == identity (eval)

    h = conv_bn_relu(x_ncl, params["w1"], params["b1"], params["g1"],
                     params["be1"], params["m1"], params["v1"])
    h = conv_bn_relu(h, params["w2"], params["b2"], params["g2"],
                     params["be2"], params["m2"], params["v2"])
    return h + x_ncl


if __name__ == "__main__":
    # small shapes consistent with the module
    N, C, L, K = 2, 32, 16, 3
    dropout = 0.1  # TODO(synk): dropout/BN training-mode have no effect in eval forward (identity / running stats)

    key = jax.random.PRNGKey(0)
    ks = jax.random.split(key, 13)
    params = {
        # conv1
        "w1": 0.1 * jax.random.normal(ks[0], (C, C, K), jnp.float32),
        "b1": 0.1 * jax.random.normal(ks[1], (C,), jnp.float32),
        # bn1 (gamma, beta, running mean, running var)
        "g1": 1.0 + 0.1 * jax.random.normal(ks[2], (C,), jnp.float32),
        "be1": 0.1 * jax.random.normal(ks[3], (C,), jnp.float32),
        "m1": 0.1 * jax.random.normal(ks[4], (C,), jnp.float32),
        "v1": 0.5 + jnp.abs(jax.random.normal(ks[5], (C,), jnp.float32)),
        # conv2
        "w2": 0.1 * jax.random.normal(ks[6], (C, C, K), jnp.float32),
        "b2": 0.1 * jax.random.normal(ks[7], (C,), jnp.float32),
        # bn2
        "g2": 1.0 + 0.1 * jax.random.normal(ks[8], (C,), jnp.float32),
        "be2": 0.1 * jax.random.normal(ks[9], (C,), jnp.float32),
        "m2": 0.1 * jax.random.normal(ks[10], (C,), jnp.float32),
        "v2": 0.5 + jnp.abs(jax.random.normal(ks[11], (C,), jnp.float32)),
    }

    x = jax.random.normal(ks[12], (N, C, L), jnp.float32)  # NCL, like torch

    out = jax.block_until_ready(resblock_pallas(x, params))
    ref = jax.block_until_ready(resblock_reference(x, params))

    np.testing.assert_allclose(np.asarray(out), np.asarray(ref),
                               rtol=1e-4, atol=1e-4)
    print("KERNEL_OK")
</pallas_src>

<mosaic_0001>
module attributes {stable_mosaic.version = 11 : i64} {
  func.func @resblock_kernel(%arg0: i32, %arg1: memref<2x18x128xf32, #tpu.memory_space<vmem>>, %arg2: memref<2x384x128xf32, #tpu.memory_space<vmem>>, %arg3: memref<4x128xf32, #tpu.memory_space<vmem>>, %arg4: memref<2x16x128xf32, #tpu.memory_space<vmem>>) attributes {dimension_semantics = [#tpu.dimension_semantics<parallel>], iteration_bounds = array<i64: 1>, scalar_prefetch = 0 : i64, scratch_operands = 0 : i64, tpu.core_type = #tpu.core_type<tc>, window_params = [{transform_indices = @transform_0, window_bounds = array<i64: 2, 18, 128>}, {pipeline_mode = #tpu.pipeline_mode<synchronous>, transform_indices = @transform_1, window_bounds = array<i64: 2, 384, 128>}, {pipeline_mode = #tpu.pipeline_mode<synchronous>, transform_indices = @transform_2, window_bounds = array<i64: 4, 128>}, {transform_indices = @transform_3, window_bounds = array<i64: 2, 16, 128>}]} {
    %c0 = arith.constant 0 : index
    %c0_0 = arith.constant 0 : index
    %c0_1 = arith.constant 0 : index
    %0 = vector.load %arg1[%c0, %c0_0, %c0_1] : memref<2x18x128xf32, #tpu.memory_space<vmem>>, vector<2x18x128xf32>
    %1 = vector.extract_strided_slice %0 {offsets = [0, 0, 0], sizes = [2, 16, 128], strides = [1, 1, 1]} : vector<2x18x128xf32> to vector<2x16x128xf32>
    %2 = vector.extract_strided_slice %0 {offsets = [0, 1, 0], sizes = [2, 16, 128], strides = [1, 1, 1]} : vector<2x18x128xf32> to vector<2x16x128xf32>
    %3 = vector.extract_strided_slice %0 {offsets = [0, 2, 0], sizes = [2, 16, 128], strides = [1, 1, 1]} : vector<2x18x128xf32> to vector<2x16x128xf32>
    %4 = tpu.concatenate %1, %2, %3 in 2 : vector<2x16x128xf32>, vector<2x16x128xf32>, vector<2x16x128xf32> -> vector<2x16x384xf32>
    %5 = vector.shape_cast %4 : vector<2x16x384xf32> to vector<32x384xf32>
    %c0_2 = arith.constant 0 : index
    %c0_3 = arith.constant 0 : index
    %c0_4 = arith.constant 0 : index
    %6 = vector.load %arg2[%c0_2, %c0_3, %c0_4] : memref<2x384x128xf32, #tpu.memory_space<vmem>>, vector<1x384x128xf32>
    %7 = vector.shape_cast %6 : vector<1x384x128xf32> to vector<384x128xf32>
    %cst = arith.constant dense<0.000000e+00> : vector<32x128xf32>
    %8 = tpu.matmul %5, %7, %cst {dimension_numbers = #tpu.dot_dimension_numbers<[1], [0], [0], [1], [0, 0, 1, 1], [], []>} : vector<32x384xf32>, vector<384x128xf32>, vector<32x128xf32> -> vector<32x128xf32>
    %c0_5 = arith.constant 0 : index
    %c0_6 = arith.constant 0 : index
    %9 = vector.load %arg3[%c0_5, %c0_6] : memref<4x128xf32, #tpu.memory_space<vmem>>, vector<1x128xf32>
    %10 = vector.broadcast %9 : vector<1x128xf32> to vector<32x128xf32>
    %11 = arith.mulf %8, %10 : vector<32x128xf32>
    %c1 = arith.constant 1 : index
    %c0_7 = arith.constant 0 : index
    %12 = vector.load %arg3[%c1, %c0_7] : memref<4x128xf32, #tpu.memory_space<vmem>>, vector<1x128xf32>
    %13 = vector.broadcast %12 : vector<1x128xf32> to vector<32x128xf32>
    %14 = arith.addf %11, %13 : vector<32x128xf32>
    %cst_8 = arith.constant 0.000000e+00 : f32
    %15 = vector.broadcast %cst_8 : f32 to vector<32x128xf32>
    %16 = arith.maximumf %14, %15 : vector<32x128xf32>
    %17 = vector.shape_cast %16 : vector<32x128xf32> to vector<2x16x128xf32>
    %cst_9 = arith.constant 0.000000e+00 : f32
    %18 = vector.broadcast %cst_9 : f32 to vector<2x1x128xf32>
    %19 = tpu.concatenate %18, %17, %18 in 1 : vector<2x1x128xf32>, vector<2x16x128xf32>, vector<2x1x128xf32> -> vector<2x18x128xf32>
    %20 = vector.extract_strided_slice %19 {offsets = [0, 0, 0], sizes = [2, 16, 128], strides = [1, 1, 1]} : vector<2x18x128xf32> to vector<2x16x128xf32>
    %21 = vector.extract_strided_slice %19 {offsets = [0, 1, 0], sizes = [2, 16, 128], strides = [1, 1, 1]} : vector<2x18x128xf32> to vector<2x16x128xf32>
    %22 = vector.extract_strided_slice %19 {offsets = [0, 2, 0], sizes = [2, 16, 128], strides = [1, 1, 1]} : vector<2x18x128xf32> to vector<2x16x128xf32>
    %23 = tpu.concatenate %20, %21, %22 in 2 : vector<2x16x128xf32>, vector<2x16x128xf32>, vector<2x16x128xf32> -> vector<2x16x384xf32>
    %24 = vector.shape_cast %23 : vector<2x16x384xf32> to vector<32x384xf32>
    %c1_10 = arith.constant 1 : index
    %c0_11 = arith.constant 0 : index
    %c0_12 = arith.constant 0 : index
    %25 = vector.load %arg2[%c1_10, %c0_11, %c0_12] : memref<2x384x128xf32, #tpu.memory_space<vmem>>, vector<1x384x128xf32>
    %26 = vector.shape_cast %25 : vector<1x384x128xf32> to vector<384x128xf32>
    %cst_13 = arith.constant dense<0.000000e+00> : vector<32x128xf32>
    %27 = tpu.matmul %24, %26, %cst_13 {dimension_numbers = #tpu.dot_dimension_numbers<[1], [0], [0], [1], [0, 0, 1, 1], [], []>} : vector<32x384xf32>, vector<384x128xf32>, vector<32x128xf32> -> vector<32x128xf32>
    %c2 = arith.constant 2 : index
    %c0_14 = arith.constant 0 : index
    %28 = vector.load %arg3[%c2, %c0_14] : memref<4x128xf32, #tpu.memory_space<vmem>>, vector<1x128xf32>
    %29 = vector.broadcast %28 : vector<1x128xf32> to vector<32x128xf32>
    %30 = arith.mulf %27, %29 : vector<32x128xf32>
    %c3 = arith.constant 3 : index
    %c0_15 = arith.constant 0 : index
    %31 = vector.load %arg3[%c3, %c0_15] : memref<4x128xf32, #tpu.memory_space<vmem>>, vector<1x128xf32>
    %32 = vector.broadcast %31 : vector<1x128xf32> to vector<32x128xf32>
    %33 = arith.addf %30, %32 : vector<32x128xf32>
    %cst_16 = arith.constant 0.000000e+00 : f32
    %34 = vector.broadcast %cst_16 : f32 to vector<32x128xf32>
    %35 = arith.maximumf %33, %34 : vector<32x128xf32>
    %36 = vector.extract_strided_slice %0 {offsets = [0, 1, 0], sizes = [2, 16, 128], strides = [1, 1, 1]} : vector<2x18x128xf32> to vector<2x16x128xf32>
    %37 = vector.shape_cast %35 : vector<32x128xf32> to vector<2x16x128xf32>
    %38 = arith.addf %37, %36 : vector<2x16x128xf32>
    %c0_17 = arith.constant 0 : index
    %c0_18 = arith.constant 0 : index
    %c0_19 = arith.constant 0 : index
    %39 = vector.load %arg4[%c0_17, %c0_18, %c0_19] : memref<2x16x128xf32, #tpu.memory_space<vmem>>, vector<2x16x128xf32>
    tpu.vector_store %arg4[%c0_17, %c0_18, %c0_19], %38 {strides = array<i32>} : memref<2x16x128xf32, #tpu.memory_space<vmem>>, vector<2x16x128xf32>,
    return
  }
  func.func @transform_0(%arg0: i32) -> (i32, i32, i32) {
    %c0_i32 = arith.constant 0 : i32
    %c0_i32_0 = arith.constant 0 : i32
    %c0_i32_1 = arith.constant 0 : i32
    return %arg0, %c0_i32, %c0_i32_0 : i32, i32, i32
  }
  func.func @transform_1(%arg0: i32) -> (i32, i32, i32) {
    %c0_i32 = arith.constant 0 : i32
    %c0_i32_0 = arith.constant 0 : i32
    %c0_i32_1 = arith.constant 0 : i32
    %c0_i32_2 = arith.constant 0 : i32
    return %c0_i32, %c0_i32_0, %c0_i32_1 : i32, i32, i32
  }
  func.func @transform_2(%arg0: i32) -> (i32, i32) {
    %c0_i32 = arith.constant 0 : i32
    %c0_i32_0 = arith.constant 0 : i32
    %c0_i32_1 = arith.constant 0 : i32
    return %c0_i32, %c0_i32_0 : i32, i32
  }
  func.func @transform_3(%arg0: i32) -> (i32, i32, i32) {
    %c0_i32 = arith.constant 0 : i32
    %c0_i32_0 = arith.constant 0 : i32
    %c0_i32_1 = arith.constant 0 : i32
    return %arg0, %c0_i32, %c0_i32_0 : i32, i32, i32
  }
}

</mosaic_0001>

<llo_original>
// kernel: tpu_custom_call.1
$region0: #{tpu_custom_call.1}
  #allocation0 [shape = 'u32[]', space=smem, size = 0x4, offset = 0x4, fixed_abs, tag = 'smem constant byte address 0x4 - core index']
  #allocation1 [shape = 'u32[144,128]{1,0:T(1,128)}', space=vmem, size = 0x12000, scoped, tag = 'internal scratch']
  %s0 = inlined_call_operand.vmem [shape: f32[2,18,128], index: 0, kind: input, shape index: {}]
  %s1 = inlined_call_operand.hbm [shape: f32[2,384,128], index: 1, kind: input, shape index: {}]
  %s2 = inlined_call_operand.vmem [shape: f32[4,128], index: 2, kind: input, shape index: {}]
  %s3 = inlined_call_operand.hbm [shape: f32[2,16,128], index: 3, kind: output, shape index: {}]
  %s4 = sld [smem:[#allocation0]]
  $region26: #{tpu_custom_call.1} parent=0
    _
  %s6 = ssub.s32 1, %s4
  %s7 = scalar_select 0, %s6, %s4
  $region1: #{tpu_custom_call.1} parent=0
    #allocation2 [shape = 'u8[393216]{0}', space=vmem, size = 0x60000, scoped, tag = 'input window, operand 1, single buffered']
    #allocation3 [shape = 's32[1]{0}', space=sflag, size = 0x4, scoped, tag = 'scoped memory for tpu_custom_call.1']
    #allocation4 [shape = 's32[1]{0}', space=sflag, size = 0x4, scoped, tag = 'scoped memory for tpu_custom_call.1']
    #allocation5 [shape = 'u8[16384]{0}', space=vmem, size = 0x4000, scoped, tag = 'output window, operand 0, single buffered']
    %8 = vsyncpa [#allocation3], 0
    %9 = vsyncpa [#allocation4], 0
    // Predicated region
    $region2: #{tpu_custom_call.1} parent=1 // pred_check
      _
    $region3: #{tpu_custom_call.1} parent=1 // pred_check_branch
      %11 = sbr.rel (0) target = $region5
    $region4: #{tpu_custom_call.1} parent=1 // pred_region
      _
    $region5: #{tpu_custom_call.1} parent=1 // pred_fallthru
      _
    // Predicated region
    $region6: #{tpu_custom_call.1} parent=1 // pred_check
      _
    $region7: #{tpu_custom_call.1} parent=1 // pred_check_branch
      %13 = sbr.rel (0) target = $region9
    $region8: #{tpu_custom_call.1} parent=1 // pred_region
      %s15 = ssub.s32 12288, 12288
      %16 = vsyncadd [#allocation3], %s15
      %s17 = sshll.u32 [#allocation2], 4
      %s18 = int_to_ptr.vmem [resolvable:$true] %s17
      %23 = dma.hbm_to_vmem [thread:$0]  %s1, 12288, %s18, [#allocation3], 128, 128, 8
    $region9: #{tpu_custom_call.1} parent=1 // pred_fallthru
      _
    // Predicated region
    $region10: #{tpu_custom_call.1} parent=1 // pred_check
      _
    $region11: #{tpu_custom_call.1} parent=1 // pred_check_branch
      %25 = sbr.rel (0) target = $region13
    $region12: #{tpu_custom_call.1} parent=1 // pred_region
      _
    $region13: #{tpu_custom_call.1} parent=1 // pred_fallthru
      _
    // Predicated region
    $region14: #{tpu_custom_call.1} parent=1 // pred_check
      _
    $region15: #{tpu_custom_call.1} parent=1 // pred_check_branch
      %27 = sbr.rel (0) target = $region17
    $region16: #{tpu_custom_call.1} parent=1 // pred_region
      %28 = dma.done [#allocation3], 12288
    $region17: #{tpu_custom_call.1} parent=1 // pred_fallthru
      _
    %v29 = vld [vmem:[%s0] sm:$0xff]
    %v30 = vld [vmem:[%s0 + $0x8] sm:$0xff]
    %v31 = vld [vmem:[%s0 + $0x10] sm:$0x3]
    %v32 = vld [vmem:[%s0 + $0x18] sm:$0xff]
    %v33 = vld [vmem:[%s0 + $0x20] sm:$0xff]
    %v34 = vld [vmem:[%s0 + $0x28] sm:$0x3]
    %vm41 = vcmask 1046528
    %v42 = vrot.slane %v29, 1
    %v43 = vrot.slane %v30, 1
    %v44 = vsel %vm41, %v42, %v43
    %v45 = vrot.slane %v31, 1
    %v46 = vsel %vm41, %v43, %v45
    %v47 = vrot.slane %v32, 1
    %v48 = vrot.slane %v33, 1
    %v49 = vsel %vm41, %v47, %v48
    %v50 = vrot.slane %v34, 1
    %v51 = vsel %vm41, %v48, %v50
    %vm56 = vcmask 1045504
    %v57 = vrot.slane %v29, 2
    %v58 = vrot.slane %v30, 2
    %v59 = vsel %vm56, %v57, %v58
    %v60 = vrot.slane %v31, 2
    %v61 = vsel %vm56, %v58, %v60
    %v62 = vrot.slane %v32, 2
    %v63 = vrot.slane %v33, 2
    %v64 = vsel %vm56, %v62, %v63
    %v65 = vrot.slane %v34, 2
    %v66 = vsel %vm56, %v63, %v65
    %v71 = vld [vmem:[#allocation2] sm:$0xff]
    %v72 = vld [vmem:[#allocation2 + $0x8] sm:$0xff]
    %v73 = vld [vmem:[#allocation2 + $0x10] sm:$0xff]
    %v74 = vld [vmem:[#allocation2 + $0x18] sm:$0xff]
    %v75 = vld [vmem:[#allocation2 + $0x20] sm:$0xff]
    %v76 = vld [vmem:[#allocation2 + $0x28] sm:$0xff]
    %v77 = vld [vmem:[#allocation2 + $0x30] sm:$0xff]
    %v78 = vld [vmem:[#allocation2 + $0x38] sm:$0xff]
    %v79 = vld [vmem:[#allocation2 + $0x40] sm:$0xff]
    %v80 = vld [vmem:[#allocation2 + $0x48] sm:$0xff]
    %v81 = vld [vmem:[#allocation2 + $0x50] sm:$0xff]
    %v82 = vld [vmem:[#allocation2 + $0x58] sm:$0xff]
    %v83 = vld [vmem:[#allocation2 + $0x60] sm:$0xff]
    %v84 = vld [vmem:[#allocation2 + $0x68] sm:$0xff]
    %v85 = vld [vmem:[#allocation2 + $0x70] sm:$0xff]
    %v86 = vld [vmem:[#allocation2 + $0x78] sm:$0xff]
    %v87 = vld [vmem:[#allocation2 + $0x80] sm:$0xff]
    %v88 = vld [vmem:[#allocation2 + $0x88] sm:$0xff]
    %v89 = vld [vmem:[#allocation2 + $0x90] sm:$0xff]
    %v90 = vld [vmem:[#allocation2 + $0x98] sm:$0xff]
    %v91 = vld [vmem:[#allocation2 + $0xa0] sm:$0xff]
    %v92 = vld [vmem:[#allocation2 + $0xa8] sm:$0xff]
    %v93 = vld [vmem:[#allocation2 + $0xb0] sm:$0xff]
    %v94 = vld [vmem:[#allocation2 + $0xb8] sm:$0xff]
    %v95 = vld [vmem:[#allocation2 + $0xc0] sm:$0xff]
    %v96 = vld [vmem:[#allocation2 + $0xc8] sm:$0xff]
    %v97 = vld [vmem:[#allocation2 + $0xd0] sm:$0xff]
    %v98 = vld [vmem:[#allocation2 + $0xd8] sm:$0xff]
    %v99 = vld [vmem:[#allocation2 + $0xe0] sm:$0xff]
    %v100 = vld [vmem:[#allocation2 + $0xe8] sm:$0xff]
    %v101 = vld [vmem:[#allocation2 + $0xf0] sm:$0xff]
    %v102 = vld [vmem:[#allocation2 + $0xf8] sm:$0xff]
    %v103 = vld [vmem:[#allocation2 + $0x100] sm:$0xff]
    %v104 = vld [vmem:[#allocation2 + $0x108] sm:$0xff]
    %v105 = vld [vmem:[#allocation2 + $0x110] sm:$0xff]
    %v106 = vld [vmem:[#allocation2 + $0x118] sm:$0xff]
    %v107 = vld [vmem:[#allocation2 + $0x120] sm:$0xff]
    %v108 = vld [vmem:[#allocation2 + $0x128] sm:$0xff]
    %v109 = vld [vmem:[#allocation2 + $0x130] sm:$0xff]
    %v110 = vld [vmem:[#allocation2 + $0x138] sm:$0xff]
    %v111 = vld [vmem:[#allocation2 + $0x140] sm:$0xff]
    %v112 = vld [vmem:[#allocation2 + $0x148] sm:$0xff]
    %v113 = vld [vmem:[#allocation2 + $0x150] sm:$0xff]
    %v114 = vld [vmem:[#allocation2 + $0x158] sm:$0xff]
    %v115 = vld [vmem:[#allocation2 + $0x160] sm:$0xff]
    %v116 = vld [vmem:[#allocation2 + $0x168] sm:$0xff]
    %v117 = vld [vmem:[#allocation2 + $0x170] sm:$0xff]
    %v118 = vld [vmem:[#allocation2 + $0x178] sm:$0xff]
    %119 = vmatprep.subr.mxu0 0.0
    %120 = vmatpush1.msra.mxu0 %v71
    %121 = vmatprep.subr.mxu0 0.0
    %122 = vmatpush1.msra.mxu0 %v72
    %123 = vmatprep.subr.mxu0 0.0
    %124 = vmatpush1.msra.mxu0 %v73
    %125 = vmatprep.subr.mxu0 0.0
    %126 = vmatpush1.msra.mxu0 %v74
    %127 = vmatprep.subr.mxu0 0.0
    %128 = vmatpush1.msra.mxu0 %v75
    %129 = vmatprep.subr.mxu0 0.0
    %130 = vmatpush1.msra.mxu0 %v76
    %131 = vmatprep.subr.mxu0 0.0
    %132 = vmatpush1.msra.mxu0 %v77
    %133 = vmatprep.subr.mxu0 0.0
    %134 = vmatpush1.msra.mxu0 %v78
    %135 = vmatprep.subr.mxu0 0.0
    %136 = vmatpush1.msra.mxu0 %v79
    %137 = vmatprep.subr.mxu0 0.0
    %138 = vmatpush1.msra.mxu0 %v80
    %139 = vmatprep.subr.mxu0 0.0
    %140 = vmatpush1.msra.mxu0 %v81
    %141 = vmatprep.subr.mxu0 0.0
    %142 = vmatpush1.msra.mxu0 %v82
    %143 = vmatprep.subr.mxu0 0.0
    %144 = vmatpush1.msra.mxu0 %v83
    %145 = vmatprep.subr.mxu0 0.0
    %146 = vmatpush1.msra.mxu0 %v84
    %147 = vmatprep.subr.mxu0 0.0
    %148 = vmatpush1.msra.mxu0 %v85
    %149 = vmatprep.subr.mxu0 0.0
    %150 = vmatpush1.msra.mxu0 %v86
    %151 = vmatprep.subr.mxu0 0.0
    %152 = vmatpush1.msra.mxu0 %v87
    %153 = vmatprep.subr.mxu0 0.0
    %154 = vmatpush1.msra.mxu0 %v88
    %155 = vmatprep.subr.mxu0 0.0
    %156 = vmatpush1.msra.mxu0 %v89
    %157 = vmatprep.subr.mxu0 0.0
    %158 = vmatpush1.msra.mxu0 %v90
    %159 = vmatprep.subr.mxu0 0.0
    %160 = vmatpush1.msra.mxu0 %v91
    %161 = vmatprep.subr.mxu0 0.0
    %162 = vmatpush1.msra.mxu0 %v92
    %163 = vmatprep.subr.mxu0 0.0
    %164 = vmatpush1.msra.mxu0 %v93
    %165 = vmatprep.subr.mxu0 0.0
    %166 = vmatpush1.msra.mxu0 %v94
    %167 = vmatprep.subr.mxu0 0.0
    %168 = vmatpush1.msra.mxu0 %v95
    %169 = vmatprep.subr.mxu0 0.0
    %170 = vmatpush1.msra.mxu0 %v96
    %171 = vmatprep.subr.mxu0 0.0
    %172 = vmatpush1.msra.mxu0 %v97
    %173 = vmatprep.subr.mxu0 0.0
    %174 = vmatpush1.msra.mxu0 %v98
    %175 = vmatprep.subr.mxu0 0.0
    %176 = vmatpush1.msra.mxu0 %v99
    %177 = vmatprep.subr.mxu0 0.0
    %178 = vmatpush1.msra.mxu0 %v100
    %179 = vmatprep.subr.mxu0 0.0
    %180 = vmatpush1.msra.mxu0 %v101
    %181 = vmatprep.subr.mxu0 0.0
    %182 = vmatpush1.msra.mxu0 %v102
    %183 = vmatprep.mubr.f32.mxu0 %v44
    %184 = vmatmul.mubr.f32.gmra.mrb[0].mxu0 %v29
    %v185 = vpop.f32.mrb[0].mxu0
    %v186 = vadd.f32 0.0, %v185
    %v187 = vpop.f32.mrb[0].mxu0
    %188 = vmatprep.mubr.f32.mxu0 %v46
    %189 = vmatmul.mubr.f32.gmra.mrb[0].mxu0 %v30
    %v190 = vpop.f32.mrb[0].mxu0
    %v191 = vadd.f32 0.0, %v190
    %v192 = vpop.f32.mrb[0].mxu0
    %193 = vmatprep.mubr.f32.mxu0 %v49
    %194 = vmatmul.mubr.f32.gmra.mrb[0].mxu0 %v32
    %v195 = vpop.f32.mrb[0].mxu0
    %v196 = vadd.f32 0.0, %v195
    %v197 = vpop.f32.mrb[0].mxu0
    %198 = vmatprep.mubr.f32.mxu0 %v51
    %199 = vmatmul.mubr.f32.gmra.mrb[0].mxu0 %v33
    %v200 = vpop.f32.mrb[0].mxu0
    %v201 = vadd.f32 0.0, %v200
    %v202 = vpop.f32.mrb[0].mxu0
    %203 = vdwg.mxu0
    %204 = vmatprep.subr.mxu0 0.0
    %205 = vmatpush1.msra.mxu0 %v103
    %206 = vmatprep.subr.mxu0 0.0
    %207 = vmatpush1.msra.mxu0 %v104
    %208 = vmatprep.subr.mxu0 0.0
    %209 = vmatpush1.msra.mxu0 %v105
    %210 = vmatprep.subr.mxu0 0.0
    %211 = vmatpush1.msra.mxu0 %v106
    %212 = vmatprep.subr.mxu0 0.0
    %213 = vmatpush1.msra.mxu0 %v107
    %214 = vmatprep.subr.mxu0 0.0
    %215 = vmatpush1.msra.mxu0 %v108
    %216 = vmatprep.subr.mxu0 0.0
    %217 = vmatpush1.msra.mxu0 %v109
    %218 = vmatprep.subr.mxu0 0.0
    %219 = vmatpush1.msra.mxu0 %v110
    %220 = vmatprep.subr.mxu0 0.0
    %221 = vmatpush1.msra.mxu0 %v111
    %222 = vmatprep.subr.mxu0 0.0
    %223 = vmatpush1.msra.mxu0 %v112
    %224 = vmatprep.subr.mxu0 0.0
    %225 = vmatpush1.msra.mxu0 %v113
    %226 = vmatprep.subr.mxu0 0.0
    %227 = vmatpush1.msra.mxu0 %v114
    %228 = vmatprep.subr.mxu0 0.0
    %229 = vmatpush1.msra.mxu0 %v115
    %230 = vmatprep.subr.mxu0 0.0
    %231 = vmatpush1.msra.mxu0 %v116
    %232 = vmatprep.subr.mxu0 0.0
    %233 = vmatpush1.msra.mxu0 %v117
    %234 = vmatprep.subr.mxu0 0.0
    %235 = vmatpush1.msra.mxu0 %v118
    %236 = vmatprep.subr.mxu0 0.0
    %237 = vmatpush1.msra.mxu0 0.0
    %238 = vmatprep.subr.mxu0 0.0
    %239 = vmatpush1.msra.mxu0 0.0
    %240 = vmatprep.subr.mxu0 0.0
    %241 = vmatpush1.msra.mxu0 0.0
    %242 = vmatprep.subr.mxu0 0.0
    %243 = vmatpush1.msra.mxu0 0.0
    %244 = vmatprep.subr.mxu0 0.0
    %245 = vmatpush1.msra.mxu0 0.0
    %246 = vmatprep.subr.mxu0 0.0
    %247 = vmatpush1.msra.mxu0 0.0
    %248 = vmatprep.subr.mxu0 0.0
    %249 = vmatpush1.msra.mxu0 0.0
    %250 = vmatprep.subr.mxu0 0.0
    %251 = vmatpush1.msra.mxu0 0.0
    %252 = vmatprep.subr.mxu0 0.0
    %253 = vmatpush1.msra.mxu0 0.0
    %254 = vmatprep.subr.mxu0 0.0
    %255 = vmatpush1.msra.mxu0 0.0
    %256 = vmatprep.subr.mxu0 0.0
    %257 = vmatpush1.msra.mxu0 0.0
    %258 = vmatprep.subr.mxu0 0.0
    %259 = vmatpush1.msra.mxu0 0.0
    %260 = vmatprep.subr.mxu0 0.0
    %261 = vmatpush1.msra.mxu0 0.0
    %262 = vmatprep.subr.mxu0 0.0
    %263 = vmatpush1.msra.mxu0 0.0
    %264 = vmatprep.subr.mxu0 0.0
    %265 = vmatpush1.msra.mxu0 0.0
    %266 = vmatprep.subr.mxu0 0.0
    %267 = vmatpush1.msra.mxu0 0.0
    %268 = vmatprep.mubr.f32.mxu0 0.0
    %269 = vmatmul.mubr.f32.gmra.mrb[0].mxu0 %v59
    %v270 = vpop.f32.mrb[0].mxu0
    %v271 = vadd.f32 %v186, %v270
    %v272 = vpop.f32.mrb[0].mxu0
    %273 = vmatprep.mubr.f32.mxu0 0.0
    %274 = vmatmul.mubr.f32.gmra.mrb[0].mxu0 %v61
    %v275 = vpop.f32.mrb[0].mxu0
    %v276 = vadd.f32 %v191, %v275
    %v277 = vpop.f32.mrb[0].mxu0
    %278 = vmatprep.mubr.f32.mxu0 0.0
    %279 = vmatmul.mubr.f32.gmra.mrb[0].mxu0 %v64
    %v280 = vpop.f32.mrb[0].mxu0
    %v281 = vadd.f32 %v196, %v280
    %v282 = vpop.f32.mrb[0].mxu0
    %283 = vmatprep.mubr.f32.mxu0 0.0
    %284 = vmatmul.mubr.f32.gmra.mrb[0].mxu0 %v66
    %v285 = vpop.f32.mrb[0].mxu0
    %v286 = vadd.f32 %v201, %v285
    %v287 = vpop.f32.mrb[0].mxu0
    %288 = vdwg.mxu0
    %v289 = vld [vmem:[%s2] sm:$0x1]
    %v290 = vlaneseq
    %v291 = vshrl.u32 %v290, 7
    %v292 = vsub.s32 0, %v291
    %v293 = vrot.slane %v289, %v292
    %v294 = vmul.f32 %v271, %v293
    %v295 = vmul.f32 %v276, %v293
    %v296 = vmul.f32 %v281, %v293
    %v297 = vmul.f32 %v286, %v293
    %v298 = vld [vmem:[%s2 + $0x1] sm:$0x1]
    %v299 = vlaneseq
    %v300 = vshrl.u32 %v299, 7
    %v301 = vsub.s32 0, %v300
    %v302 = vrot.slane %v298, %v301
    %v303 = vadd.f32 %v294, %v302
    %v304 = vadd.f32 %v295, %v302
    %v305 = vadd.f32 %v296, %v302
    %v306 = vadd.f32 %v297, %v302
    %v307 = vmax.f32 %v303, 0.0
    %v308 = vmax.f32 %v304, 0.0
    %v309 = vmax.f32 %v305, 0.0
    %v310 = vmax.f32 %v306, 0.0
    %vm315 = vcmask 1040384
    %v316 = vrot.slane %v307, 7
    %v317 = vrot.slane %v308, 7
    %v318 = vsel %vm315, %v316, %v317
    %v319 = vrot.slane %v309, 7
    %v320 = vrot.slane %v310, 7
    %v321 = vsel %vm315, %v319, %v320
    %v328 = vsel %vm315, 0.0, %v316
    %v329 = vsel %vm315, 0.0, %v319
    %v330 = vsel %vm315, %v317, 0.0
    %v331 = vsel %vm315, %v320, 0.0
    %v336 = vrot.slane %v328, 1
    %v337 = vrot.slane %v318, 1
    %v338 = vsel %vm41, %v336, %v337
    %v339 = vrot.slane %v330, 1
    %v340 = vsel %vm41, %v337, %v339
    %v341 = vrot.slane %v329, 1
    %v342 = vrot.slane %v321, 1
    %v343 = vsel %vm41, %v341, %v342
    %v344 = vrot.slane %v331, 1
    %v345 = vsel %vm41, %v342, %v344
    %v350 = vrot.slane %v328, 2
    %v351 = vrot.slane %v318, 2
    %v352 = vsel %vm56, %v350, %v351
    %v353 = vrot.slane %v330, 2
    %v354 = vsel %vm56, %v351, %v353
    %v355 = vrot.slane %v329, 2
    %v356 = vrot.slane %v321, 2
    %v357 = vsel %vm56, %v355, %v356
    %v358 = vrot.slane %v331, 2
    %v359 = vsel %vm56, %v356, %v358
    %s364 = scalar_lea.vmem [#allocation2], 384
    %v365 = vld [vmem:[%s364] sm:$0xff]
    %v366 = vld [vmem:[%s364 + $0x8] sm:$0xff]
    %v367 = vld [vmem:[%s364 + $0x10] sm:$0xff]
    %v368 = vld [vmem:[%s364 + $0x18] sm:$0xff]
    %v369 = vld [vmem:[%s364 + $0x20] sm:$0xff]
    %v370 = vld [vmem:[%s364 + $0x28] sm:$0xff]
    %v371 = vld [vmem:[%s364 + $0x30] sm:$0xff]
    %v372 = vld [vmem:[%s364 + $0x38] sm:$0xff]
    %v373 = vld [vmem:[%s364 + $0x40] sm:$0xff]
    %v374 = vld [vmem:[%s364 + $0x48] sm:$0xff]
    %v375 = vld [vmem:[%s364 + $0x50] sm:$0xff]
    %v376 = vld [vmem:[%s364 + $0x58] sm:$0xff]
    %v377 = vld [vmem:[%s364 + $0x60] sm:$0xff]
    %v378 = vld [vmem:[%s364 + $0x68] sm:$0xff]
    %v379 = vld [vmem:[%s364 + $0x70] sm:$0xff]
    %v380 = vld [vmem:[%s364 + $0x78] sm:$0xff]
    %v381 = vld [vmem:[%s364 + $0x80] sm:$0xff]
    %v382 = vld [vmem:[%s364 + $0x88] sm:$0xff]
    %v383 = vld [vmem:[%s364 + $0x90] sm:$0xff]
    %v384 = vld [vmem:[%s364 + $0x98] sm:$0xff]
    %v385 = vld [vmem:[%s364 + $0xa0] sm:$0xff]
    %v386 = vld [vmem:[%s364 + $0xa8] sm:$0xff]
    %v387 = vld [vmem:[%s364 + $0xb0] sm:$0xff]
    %v388 = vld [vmem:[%s364 + $0xb8] sm:$0xff]
    %v389 = vld [vmem:[%s364 + $0xc0] sm:$0xff]
    %v390 = vld [vmem:[%s364 + $0xc8] sm:$0xff]
    %v391 = vld [vmem:[%s364 + $0xd0] sm:$0xff]
    %v392 = vld [vmem:[%s364 + $0xd8] sm:$0xff]
    %v393 = vld [vmem:[%s364 + $0xe0] sm:$0xff]
    %v394 = vld [vmem:[%s364 + $0xe8] sm:$0xff]
    %v395 = vld [vmem:[%s364 + $0xf0] sm:$0xff]
    %v396 = vld [vmem:[%s364 + $0xf8] sm:$0xff]
    %v397 = vld [vmem:[%s364 + $0x100] sm:$0xff]
    %v398 = vld [vmem:[%s364 + $0x108] sm:$0xff]
    %v399 = vld [vmem:[%s364 + $0x110] sm:$0xff]
    %v400 = vld [vmem:[%s364 + $0x118] sm:$0xff]
    %v401 = vld [vmem:[%s364 + $0x120] sm:$0xff]
    %v402 = vld [vmem:[%s364 + $0x128] sm:$0xff]
    %v403 = vld [vmem:[%s364 + $0x130] sm:$0xff]
    %v404 = vld [vmem:[%s364 + $0x138] sm:$0xff]
    %v405 = vld [vmem:[%s364 + $0x140] sm:$0xff]
    %v406 = vld [vmem:[%s364 + $0x148] sm:$0xff]
    %v407 = vld [vmem:[%s364 + $0x150] sm:$0xff]
    %v408 = vld [vmem:[%s364 + $0x158] sm:$0xff]
    %v409 = vld [vmem:[%s364 + $0x160] sm:$0xff]
    %v410 = vld [vmem:[%s364 + $0x168] sm:$0xff]
    %v411 = vld [vmem:[%s364 + $0x170] sm:$0xff]
    %v412 = vld [vmem:[%s364 + $0x178] sm:$0xff]
    %413 = vmatprep.subr.mxu0 0.0
    %414 = vmatpush1.msra.mxu0 %v365
    %415 = vmatprep.subr.mxu0 0.0
    %416 = vmatpush1.msra.mxu0 %v366
    %417 = vmatprep.subr.mxu0 0.0
    %418 = vmatpush1.msra.mxu0 %v367
    %419 = vmatprep.subr.mxu0 0.0
    %420 = vmatpush1.msra.mxu0 %v368
    %421 = vmatprep.subr.mxu0 0.0
    %422 = vmatpush1.msra.mxu0 %v369
    %423 = vmatprep.subr.mxu0 0.0
    %424 = vmatpush1.msra.mxu0 %v370
    %425 = vmatprep.subr.mxu0 0.0
    %426 = vmatpush1.msra.mxu0 %v371
    %427 = vmatprep.subr.mxu0 0.0
    %428 = vmatpush1.msra.mxu0 %v372
    %429 = vmatprep.subr.mxu0 0.0
    %430 = vmatpush1.msra.mxu0 %v373
    %431 = vmatprep.subr.mxu0 0.0
    %432 = vmatpush1.msra.mxu0 %v374
    %433 = vmatprep.subr.mxu0 0.0
    %434 = vmatpush1.msra.mxu0 %v375
    %435 = vmatprep.subr.mxu0 0.0
    %436 = vmatpush1.msra.mxu0 %v376
    %437 = vmatprep.subr.mxu0 0.0
    %438 = vmatpush1.msra.mxu0 %v377
    %439 = vmatprep.subr.mxu0 0.0
    %440 = vmatpush1.msra.mxu0 %v378
    %441 = vmatprep.subr.mxu0 0.0
    %442 = vmatpush1.msra.mxu0 %v379
    %443 = vmatprep.subr.mxu0 0.0
    %444 = vmatpush1.msra.mxu0 %v380
    %445 = vmatprep.subr.mxu0 0.0
    %446 = vmatpush1.msra.mxu0 %v381
    %447 = vmatprep.subr.mxu0 0.0
    %448 = vmatpush1.msra.mxu0 %v382
    %449 = vmatprep.subr.mxu0 0.0
    %450 = vmatpush1.msra.mxu0 %v383
    %451 = vmatprep.subr.mxu0 0.0
    %452 = vmatpush1.msra.mxu0 %v384
    %453 = vmatprep.subr.mxu0 0.0
    %454 = vmatpush1.msra.mxu0 %v385
    %455 = vmatprep.subr.mxu0 0.0
    %456 = vmatpush1.msra.mxu0 %v386
    %457 = vmatprep.subr.mxu0 0.0
    %458 = vmatpush1.msra.mxu0 %v387
    %459 = vmatprep.subr.mxu0 0.0
    %460 = vmatpush1.msra.mxu0 %v388
    %461 = vmatprep.subr.mxu0 0.0
    %462 = vmatpush1.msra.mxu0 %v389
    %463 = vmatprep.subr.mxu0 0.0
    %464 = vmatpush1.msra.mxu0 %v390
    %465 = vmatprep.subr.mxu0 0.0
    %466 = vmatpush1.msra.mxu0 %v391
    %467 = vmatprep.subr.mxu0 0.0
    %468 = vmatpush1.msra.mxu0 %v392
    %469 = vmatprep.subr.mxu0 0.0
    %470 = vmatpush1.msra.mxu0 %v393
    %471 = vmatprep.subr.mxu0 0.0
    %472 = vmatpush1.msra.mxu0 %v394
    %473 = vmatprep.subr.mxu0 0.0
    %474 = vmatpush1.msra.mxu0 %v395
    %475 = vmatprep.subr.mxu0 0.0
    %476 = vmatpush1.msra.mxu0 %v396
    %477 = vmatprep.mubr.f32.mxu0 %v338
    %478 = vmatmul.mubr.f32.gmra.mrb[0].mxu0 %v328
    %v479 = vpop.f32.mrb[0].mxu0
    %v480 = vadd.f32 0.0, %v479
    %v481 = vpop.f32.mrb[0].mxu0
    %482 = vmatprep.mubr.f32.mxu0 %v340
    %483 = vmatmul.mubr.f32.gmra.mrb[0].mxu0 %v318
    %v484 = vpop.f32.mrb[0].mxu0
    %v485 = vadd.f32 0.0, %v484
    %v486 = vpop.f32.mrb[0].mxu0
    %487 = vmatprep.mubr.f32.mxu0 %v343
    %488 = vmatmul.mubr.f32.gmra.mrb[0].mxu0 %v329
    %v489 = vpop.f32.mrb[0].mxu0
    %v490 = vadd.f32 0.0, %v489
    %v491 = vpop.f32.mrb[0].mxu0
    %492 = vmatprep.mubr.f32.mxu0 %v345
    %493 = vmatmul.mubr.f32.gmra.mrb[0].mxu0 %v321
    %v494 = vpop.f32.mrb[0].mxu0
    %v495 = vadd.f32 0.0, %v494
    %v496 = vpop.f32.mrb[0].mxu0
    %497 = vdwg.mxu0
    %498 = vmatprep.subr.mxu0 0.0
    %499 = vmatpush1.msra.mxu0 %v397
    %500 = vmatprep.subr.mxu0 0.0
    %501 = vmatpush1.msra.mxu0 %v398
    %502 = vmatprep.subr.mxu0 0.0
    %503 = vmatpush1.msra.mxu0 %v399
    %504 = vmatprep.subr.mxu0 0.0
    %505 = vmatpush1.msra.mxu0 %v400
    %506 = vmatprep.subr.mxu0 0.0
    %507 = vmatpush1.msra.mxu0 %v401
    %508 = vmatprep.subr.mxu0 0.0
    %509 = vmatpush1.msra.mxu0 %v402
    %510 = vmatprep.subr.mxu0 0.0
    %511 = vmatpush1.msra.mxu0 %v403
    %512 = vmatprep.subr.mxu0 0.0
    %513 = vmatpush1.msra.mxu0 %v404
    %514 = vmatprep.subr.mxu0 0.0
    %515 = vmatpush1.msra.mxu0 %v405
    %516 = vmatprep.subr.mxu0 0.0
    %517 = vmatpush1.msra.mxu0 %v406
    %518 = vmatprep.subr.mxu0 0.0
    %519 = vmatpush1.msra.mxu0 %v407
    %520 = vmatprep.subr.mxu0 0.0
    %521 = vmatpush1.msra.mxu0 %v408
    %522 = vmatprep.subr.mxu0 0.0
    %523 = vmatpush1.msra.mxu0 %v409
    %524 = vmatprep.subr.mxu0 0.0
    %525 = vmatpush1.msra.mxu0 %v410
    %526 = vmatprep.subr.mxu0 0.0
    %527 = vmatpush1.msra.mxu0 %v411
    %528 = vmatprep.subr.mxu0 0.0
    %529 = vmatpush1.msra.mxu0 %v412
    %530 = vmatprep.subr.mxu0 0.0
    %531 = vmatpush1.msra.mxu0 0.0
    %532 = vmatprep.subr.mxu0 0.0
    %533 = vmatpush1.msra.mxu0 0.0
    %534 = vmatprep.subr.mxu0 0.0
    %535 = vmatpush1.msra.mxu0 0.0
    %536 = vmatprep.subr.mxu0 0.0
    %537 = vmatpush1.msra.mxu0 0.0
    %538 = vmatprep.subr.mxu0 0.0
    %539 = vmatpush1.msra.mxu0 0.0
    %540 = vmatprep.subr.mxu0 0.0
    %541 = vmatpush1.msra.mxu0 0.0
    %542 = vmatprep.subr.mxu0 0.0
    %543 = vmatpush1.msra.mxu0 0.0
    %544 = vmatprep.subr.mxu0 0.0
    %545 = vmatpush1.msra.mxu0 0.0
    %546 = vmatprep.subr.mxu0 0.0
    %547 = vmatpush1.msra.mxu0 0.0
    %548 = vmatprep.subr.mxu0 0.0
    %549 = vmatpush1.msra.mxu0 0.0
    %550 = vmatprep.subr.mxu0 0.0
    %551 = vmatpush1.msra.mxu0 0.0
    %552 = vmatprep.subr.mxu0 0.0
    %553 = vmatpush1.msra.mxu0 0.0
    %554 = vmatprep.subr.mxu0 0.0
    %555 = vmatpush1.msra.mxu0 0.0
    %556 = vmatprep.subr.mxu0 0.0
    %557 = vmatpush1.msra.mxu0 0.0
    %558 = vmatprep.subr.mxu0 0.0
    %559 = vmatpush1.msra.mxu0 0.0
    %560 = vmatprep.subr.mxu0 0.0
    %561 = vmatpush1.msra.mxu0 0.0
    %562 = vmatprep.mubr.f32.mxu0 0.0
    %563 = vmatmul.mubr.f32.gmra.mrb[0].mxu0 %v352
    %v564 = vpop.f32.mrb[0].mxu0
    %v565 = vadd.f32 %v480, %v564
    %v566 = vpop.f32.mrb[0].mxu0
    %567 = vmatprep.mubr.f32.mxu0 0.0
    %568 = vmatmul.mubr.f32.gmra.mrb[0].mxu0 %v354
    %v569 = vpop.f32.mrb[0].mxu0
    %v570 = vadd.f32 %v485, %v569
    %v571 = vpop.f32.mrb[0].mxu0
    %572 = vmatprep.mubr.f32.mxu0 0.0
    %573 = vmatmul.mubr.f32.gmra.mrb[0].mxu0 %v357
    %v574 = vpop.f32.mrb[0].mxu0
    %v575 = vadd.f32 %v490, %v574
    %v576 = vpop.f32.mrb[0].mxu0
    %577 = vmatprep.mubr.f32.mxu0 0.0
    %578 = vmatmul.mubr.f32.gmra.mrb[0].mxu0 %v359
    %v579 = vpop.f32.mrb[0].mxu0
    %v580 = vadd.f32 %v495, %v579
    %v581 = vpop.f32.mrb[0].mxu0
    %582 = vdwg.mxu0
    %v583 = vld [vmem:[%s2 + $0x2] sm:$0x1]
    %v584 = vlaneseq
    %v585 = vshrl.u32 %v584, 7
    %v586 = vsub.s32 0, %v585
    %v587 = vrot.slane %v583, %v586
    %v588 = vmul.f32 %v565, %v587
    %v589 = vmul.f32 %v570, %v587
    %v590 = vmul.f32 %v575, %v587
    %v591 = vmul.f32 %v580, %v587
    %v592 = vld [vmem:[%s2 + $0x3] sm:$0x1]
    %v593 = vlaneseq
    %v594 = vshrl.u32 %v593, 7
    %v595 = vsub.s32 0, %v594
    %v596 = vrot.slane %v592, %v595
    %v597 = vadd.f32 %v588, %v596
    %v598 = vadd.f32 %v589, %v596
    %v599 = vadd.f32 %v590, %v596
    %v600 = vadd.f32 %v591, %v596
    %v601 = vmax.f32 %v597, 0.0
    %v602 = vmax.f32 %v598, 0.0
    %v603 = vmax.f32 %v599, 0.0
    %v604 = vmax.f32 %v600, 0.0
    %v605 = vadd.f32 %v601, %v44
    %v606 = vadd.f32 %v602, %v46
    %v607 = vadd.f32 %v603, %v49
    %v608 = vadd.f32 %v604, %v51
    %609 = vst [vmem:[#allocation5] sm:$0xff] %v605
    %610 = vst [vmem:[#allocation5 + $0x8] sm:$0xff] %v606
    %611 = vst [vmem:[#allocation5 + $0x10] sm:$0xff] %v607
    %612 = vst [vmem:[#allocation5 + $0x18] sm:$0xff] %v608
    // Predicated region
    $region18: #{tpu_custom_call.1} parent=1 // pred_check
      _
    $region19: #{tpu_custom_call.1} parent=1 // pred_check_branch
      %614 = sbr.rel (0) target = $region21
    $region20: #{tpu_custom_call.1} parent=1 // pred_region
      %s616 = ssub.s32 512, 512
      %617 = vsyncadd [#allocation4], %s616
      %s618 = sshll.u32 [#allocation5], 4
      %s619 = int_to_ptr.vmem [resolvable:$true] %s618
      %624 = dma.vmem_to_hbm [thread:$0]  %s619, 512, %s3, [#allocation4], 128, 128, 8
    $region21: #{tpu_custom_call.1} parent=1 // pred_fallthru
      _
    // Predicated region
    $region22: #{tpu_custom_call.1} parent=1 // pred_check
      _
    $region23: #{tpu_custom_call.1} parent=1 // pred_check_branch
      %626 = sbr.rel (0) target = $region25
    $region24: #{tpu_custom_call.1} parent=1 // pred_region
      %627 = dma.done [#allocation4], 512
    $region25: #{tpu_custom_call.1} parent=1 // pred_fallthru
      _
    %628 = vsyncpa [#allocation3], 1
    %629 = vsyncpa [#allocation4], 1

</llo_original>
